<compile_context>
chip_gen: v6e
topology: v6e:2x2x1
jax: 0.10.0
libtpu: 0.0.40
codegen_flags: <defaults>
</compile_context>

<pallas_src>
import jax
import jax.numpy as jnp
from jax.experimental import pallas as pl
from jax.experimental.pallas import tpu as pltpu

EPS = 1e-5  # PyTorch default eps for BatchNorm1d / InstanceNorm1d


def _round_up(a: int, b: int) -> int:
    return (a + b - 1) // b * b


# ---------------- Pallas kernel: tiled (x * scale) @ M + bias -----------------------


def _etf_fold_matmul_kernel(scale_ref, x_ref, m_ref, bias_ref, o_ref, acc_ref):
    """One (tm, tn) output tile of y = (x * scale) @ M + bias, K-tiled, f32 accumulation."""
    k = pl.program_id(2)

    @pl.when(k == 0)
    def _():
        acc_ref[...] = jnp.zeros_like(acc_ref)

    # Apply the folded per-feature inv_std in f32, then cast to bf16 so the MXU runs
    # at its native rate while accumulating in f32.
    xs = (x_ref[...] * scale_ref[...]).astype(jnp.bfloat16)               # (tm, tk)
    acc_ref[...] += jnp.dot(xs, m_ref[...], preferred_element_type=jnp.float32)

    @pl.when(k == pl.num_programs(2) - 1)
    def _():
        o_ref[...] = (acc_ref[...] + bias_ref[...]).astype(o_ref.dtype)


# ---------------- wrapper -----------------------------------------------------------


def etf_linear(x, M, *, tm_max=256, tn_max=512, tk_max=512):
    """Pallas implementation of ETFLinear.forward. x: (N, feat_in), M: (feat_in, feat_out)."""
    N, feat_in = x.shape
    assert M.shape[0] == feat_in
    feat_out = M.shape[1]
    out_dtype = x.dtype

    xf = x.astype(jnp.float32)
    Mf = M.astype(jnp.float32)

    # ---- normalization statistics (tiny; plain XLA, kept in f32, decoupled from tiling)
    if N != 1:  # BatchNorm1d: per-feature stats over the batch, biased variance
        mean = jnp.mean(xf, axis=0, keepdims=True)                         # (1, Fin)
        var = jnp.mean((xf - mean) ** 2, axis=0, keepdims=True)            # (1, Fin)
    else:       # InstanceNorm1d on (1, Fin): normalize over the feature axis
        mean_s = jnp.mean(xf, axis=-1, keepdims=True)                      # (1, 1)
        var_s = jnp.mean((xf - mean_s) ** 2, axis=-1, keepdims=True)       # (1, 1)
        mean = jnp.broadcast_to(mean_s, (1, feat_in))
        var = jnp.broadcast_to(var_s, (1, feat_in))
    inv_std = jax.lax.rsqrt(var + EPS)                                     # (1, Fin)
    bias = -(mean * inv_std) @ Mf                                          # (1, Fout)

    # ---- MXU/lane-friendly tiling + zero padding (padded K columns have scale 0)
    tm = min(tm_max, _round_up(N, 8))
    tk = min(tk_max, _round_up(feat_in, 128))
    tn = min(tn_max, _round_up(feat_out, 128))
    Np = _round_up(N, tm)
    Kp = _round_up(feat_in, tk)
    Fp = _round_up(feat_out, tn)

    x_p = jnp.pad(xf, ((0, Np - N), (0, Kp - feat_in)))
    s_p = jnp.pad(inv_std, ((0, 0), (0, Kp - feat_in)))
    m_p = jnp.pad(Mf, ((0, Kp - feat_in), (0, Fp - feat_out))).astype(jnp.bfloat16)
    b_p = jnp.pad(bias, ((0, 0), (0, Fp - feat_out)))

    grid = (Np // tm, Fp // tn, Kp // tk)
    cost = pl.CostEstimate(
        flops=2 * Np * Kp * Fp,
        transcendentals=0,
        bytes_accessed=x_p.size * 4 + m_p.size * 2 + Np * Fp * 4,
    )

    y_p = pl.pallas_call(
        _etf_fold_matmul_kernel,
        out_shape=jax.ShapeDtypeStruct((Np, Fp), out_dtype),
        grid_spec=pltpu.PrefetchScalarGridSpec(
            num_scalar_prefetch=0,
            grid=grid,
            in_specs=[
                pl.BlockSpec((1, tk), lambda i, j, k: (0, k)),    # inv_std (folded scale)
                pl.BlockSpec((tm, tk), lambda i, j, k: (i, k)),   # x
                pl.BlockSpec((tk, tn), lambda i, j, k: (k, j)),   # M (bf16)
                pl.BlockSpec((1, tn), lambda i, j, k: (0, j)),    # folded bias
            ],
            out_specs=pl.BlockSpec((tm, tn), lambda i, j, k: (i, j)),
            scratch_shapes=[pltpu.VMEM((tm, tn), jnp.float32)],
        ),
        compiler_params=pltpu.CompilerParams(
            dimension_semantics=("parallel", "parallel", "arbitrary"),
            vmem_limit_bytes=48 * 1024 * 1024,   # below v7x's 64 MiB physical, above all defaults
        ),
        cost_estimate=cost,
    )(s_p, x_p, m_p, b_p)

    return y_p[:N, :feat_out]


# ---------------- parameter construction (plain JAX glue) ---------------------------


def make_etf_matrix(key, feat_in, feat_out, dtype=jnp.float32):
    """Deterministic replica of ETFLinear.__init__: M = sqrt(k/(k-1)) * P @ (I - 11^T / k)."""
    a = jax.random.uniform(key, (feat_in, feat_out), dtype=jnp.float32)
    P, _ = jnp.linalg.qr(a)                                    # (feat_in, feat_out), P^T P = I
    I = jnp.eye(feat_out, dtype=P.dtype)
    one = jnp.ones((feat_out, feat_out), dtype=P.dtype)
    M = jnp.sqrt(feat_out / (feat_out - 1.0)) * (P @ (I - one / feat_out))
    return M.astype(dtype)


def etf_linear_ref(x, M):
    """Pure-JAX (f32) reference for correctness checking."""
    x = x.astype(jnp.float32)
    if x.shape[0] != 1:
        mean = jnp.mean(x, axis=0, keepdims=True)
        var = jnp.mean((x - mean) ** 2, axis=0, keepdims=True)
    else:
        mean = jnp.mean(x, axis=-1, keepdims=True)
        var = jnp.mean((x - mean) ** 2, axis=-1, keepdims=True)
    return ((x - mean) / jnp.sqrt(var + EPS)) @ M.astype(jnp.float32)


if __name__ == "__main__":
    feat_in, feat_out = 32, 16
    batch = 8

    key = jax.random.PRNGKey(0)
    k_m, k_x = jax.random.split(key)

    M = make_etf_matrix(k_m, feat_in, feat_out)
    x = jax.random.normal(k_x, (batch, feat_in), dtype=jnp.float32)

    # batch path (N != 1  ->  BatchNorm branch)
    y = jax.block_until_ready(etf_linear(x, M))
    y_ref = etf_linear_ref(x, M)
    assert y.shape == (batch, feat_out)
    # bf16 MXU operands with f32 accumulation -> loose-ish tolerance vs f32 reference
    assert jnp.allclose(y, y_ref, atol=5e-2, rtol=5e-2), float(jnp.max(jnp.abs(y - y_ref)))

    # single-sample path (N == 1  ->  InstanceNorm branch)
    x1 = x[:1]
    y1 = jax.block_until_ready(etf_linear(x1, M))
    y1_ref = etf_linear_ref(x1, M)
    assert y1.shape == (1, feat_out)
    assert jnp.allclose(y1, y1_ref, atol=5e-2, rtol=5e-2), float(jnp.max(jnp.abs(y1 - y1_ref)))

    print("KERNEL_OK")
</pallas_src>

<mosaic_0001>
module attributes {stable_mosaic.version = 11 : i64} {
  func.func @_etf_fold_matmul_kernel(%arg0: i32, %arg1: i32, %arg2: i32, %arg3: memref<1x128xf32, #tpu.memory_space<vmem>>, %arg4: memref<8x128xf32, #tpu.memory_space<vmem>>, %arg5: memref<128x128xbf16, #tpu.memory_space<vmem>>, %arg6: memref<1x128xf32, #tpu.memory_space<vmem>>, %arg7: memref<8x128xf32, #tpu.memory_space<vmem>>, %arg8: memref<8x128xf32, #tpu.memory_space<vmem>>) attributes {dimension_semantics = [#tpu.dimension_semantics<parallel>, #tpu.dimension_semantics<parallel>, #tpu.dimension_semantics<arbitrary>], iteration_bounds = array<i64: 1, 1, 1>, scalar_prefetch = 0 : i64, scratch_operands = 1 : i64, tpu.core_type = #tpu.core_type<tc>, window_params = [{transform_indices = @transform_0, window_bounds = array<i64: 1, 128>}, {transform_indices = @transform_1, window_bounds = array<i64: 8, 128>}, {transform_indices = @transform_2, window_bounds = array<i64: 128, 128>}, {transform_indices = @transform_3, window_bounds = array<i64: 1, 128>}, {transform_indices = @transform_4, window_bounds = array<i64: 8, 128>}]} {
    %c0_i32 = arith.constant 0 : i32
    %0 = arith.cmpi eq, %arg2, %c0_i32 : i32
    %1 = arith.extui %0 : i1 to i32
    %c0_i32_0 = arith.constant 0 : i32
    %2 = arith.cmpi ne, %1, %c0_i32_0 : i32
    scf.if %2 {
      %cst_12 = arith.constant 0.000000e+00 : f32
      %16 = vector.broadcast %cst_12 : f32 to vector<8x128xf32>
      %c0_13 = arith.constant 0 : index
      %c0_14 = arith.constant 0 : index
      %17 = vector.load %arg8[%c0_13, %c0_14] : memref<8x128xf32, #tpu.memory_space<vmem>>, vector<8x128xf32>
      tpu.vector_store %arg8[%c0_13, %c0_14], %16 {strides = array<i32>} : memref<8x128xf32, #tpu.memory_space<vmem>>, vector<8x128xf32>,
    } else {
    }
    %c0 = arith.constant 0 : index
    %c0_1 = arith.constant 0 : index
    %3 = vector.load %arg4[%c0, %c0_1] : memref<8x128xf32, #tpu.memory_space<vmem>>, vector<8x128xf32>
    %c0_2 = arith.constant 0 : index
    %c0_3 = arith.constant 0 : index
    %4 = vector.load %arg3[%c0_2, %c0_3] : memref<1x128xf32, #tpu.memory_space<vmem>>, vector<1x128xf32>
    %5 = vector.broadcast %4 : vector<1x128xf32> to vector<8x128xf32>
    %6 = arith.mulf %3, %5 : vector<8x128xf32>
    %7 = arith.truncf %6 : vector<8x128xf32> to vector<8x128xbf16>
    %c0_4 = arith.constant 0 : index
    %c0_5 = arith.constant 0 : index
    %8 = vector.load %arg8[%c0_4, %c0_5] : memref<8x128xf32, #tpu.memory_space<vmem>>, vector<8x128xf32>
    %c0_6 = arith.constant 0 : index
    %c0_7 = arith.constant 0 : index
    %9 = vector.load %arg5[%c0_6, %c0_7] : memref<128x128xbf16, #tpu.memory_space<vmem>>, vector<128x128xbf16>
    %cst = arith.constant dense<0.000000e+00> : vector<8x128xf32>
    %10 = tpu.matmul %7, %9, %cst {dimension_numbers = #tpu.dot_dimension_numbers<[1], [0], [0], [1], [0, 0, 1, 1], [], []>} : vector<8x128xbf16>, vector<128x128xbf16>, vector<8x128xf32> -> vector<8x128xf32>
    %11 = arith.addf %8, %10 : vector<8x128xf32>
    %c0_8 = arith.constant 0 : index
    %c0_9 = arith.constant 0 : index
    %12 = vector.load %arg8[%c0_8, %c0_9] : memref<8x128xf32, #tpu.memory_space<vmem>>, vector<8x128xf32>
    tpu.vector_store %arg8[%c0_8, %c0_9], %11 {strides = array<i32>} : memref<8x128xf32, #tpu.memory_space<vmem>>, vector<8x128xf32>,
    %c0_i32_10 = arith.constant 0 : i32
    %13 = arith.cmpi eq, %arg2, %c0_i32_10 : i32
    %14 = arith.extui %13 : i1 to i32
    %c0_i32_11 = arith.constant 0 : i32
    %15 = arith.cmpi ne, %14, %c0_i32_11 : i32
    scf.if %15 {
      %c0_12 = arith.constant 0 : index
      %c0_13 = arith.constant 0 : index
      %16 = vector.load %arg8[%c0_12, %c0_13] : memref<8x128xf32, #tpu.memory_space<vmem>>, vector<8x128xf32>
      %c0_14 = arith.constant 0 : index
      %c0_15 = arith.constant 0 : index
      %17 = vector.load %arg6[%c0_14, %c0_15] : memref<1x128xf32, #tpu.memory_space<vmem>>, vector<1x128xf32>
      %18 = vector.broadcast %17 : vector<1x128xf32> to vector<8x128xf32>
      %19 = arith.addf %16, %18 : vector<8x128xf32>
      %c0_16 = arith.constant 0 : index
      %c0_17 = arith.constant 0 : index
      %20 = vector.load %arg7[%c0_16, %c0_17] : memref<8x128xf32, #tpu.memory_space<vmem>>, vector<8x128xf32>
      tpu.vector_store %arg7[%c0_16, %c0_17], %19 {strides = array<i32>} : memref<8x128xf32, #tpu.memory_space<vmem>>, vector<8x128xf32>,
    } else {
    }
    return
  }
  func.func @transform_0(%arg0: i32, %arg1: i32, %arg2: i32) -> (i32, i32) {
    %c0_i32 = arith.constant 0 : i32
    %c0_i32_0 = arith.constant 0 : i32
    return %c0_i32, %arg2 : i32, i32
  }
  func.func @transform_1(%arg0: i32, %arg1: i32, %arg2: i32) -> (i32, i32) {
    %c0_i32 = arith.constant 0 : i32
    return %arg0, %arg2 : i32, i32
  }
  func.func @transform_2(%arg0: i32, %arg1: i32, %arg2: i32) -> (i32, i32) {
    %c0_i32 = arith.constant 0 : i32
    return %arg2, %arg1 : i32, i32
  }
  func.func @transform_3(%arg0: i32, %arg1: i32, %arg2: i32) -> (i32, i32) {
    %c0_i32 = arith.constant 0 : i32
    %c0_i32_0 = arith.constant 0 : i32
    return %c0_i32, %arg1 : i32, i32
  }
  func.func @transform_4(%arg0: i32, %arg1: i32, %arg2: i32) -> (i32, i32) {
    %c0_i32 = arith.constant 0 : i32
    return %arg0, %arg1 : i32, i32
  }
}

</mosaic_0001>

<llo_original>
// kernel: tpu_custom_call.1
$region0: #{tpu_custom_call.1}
  #allocation0 [shape = 'u32[]', space=smem, size = 0x4, offset = 0x4, fixed_abs, tag = 'smem constant byte address 0x4 - core index']
  #allocation1 [shape = 'u32[144,128]{1,0:T(1,128)}', space=vmem, size = 0x12000, scoped, tag = 'internal scratch']
  #allocation2 [shape = 'f32[8,128]{1,0:T(8,128)}', space=vmem, size = 0x1000, scoped, tag = 'scratch operand']
  %s0 = inlined_call_operand.hbm [shape: f32[1,128], index: 0, kind: input, shape index: {}]
  %s1 = inlined_call_operand.hbm [shape: f32[8,128], index: 1, kind: input, shape index: {}]
  %s2 = inlined_call_operand.hbm [shape: bf16[128,128], index: 2, kind: input, shape index: {}]
  %s3 = inlined_call_operand.vmem [shape: f32[1,128], index: 3, kind: input, shape index: {}]
  %s4 = inlined_call_operand.hbm [shape: f32[8,128], index: 4, kind: output, shape index: {}]
  %s5 = sld [smem:[#allocation0]]
  $region46: #{tpu_custom_call.1} parent=0
    _
  %s7 = ssub.s32 1, %s5
  %s8 = scalar_select 0, %s7, %s5
  $region1: #{tpu_custom_call.1} parent=0
    #allocation3 [shape = 'u8[512]{0}', space=vmem, size = 0x400, scoped, tag = 'input window, operand 0, single buffered']
    #allocation4 [shape = 's32[1]{0}', space=sflag, size = 0x4, scoped, tag = 'scoped memory for tpu_custom_call.1']
    #allocation5 [shape = 's32[1]{0}', space=sflag, size = 0x4, scoped, tag = 'scoped memory for tpu_custom_call.1']
    #allocation6 [shape = 'u8[4096]{0}', space=vmem, size = 0x1000, scoped, tag = 'input window, operand 1, single buffered']
    #allocation7 [shape = 's32[1]{0}', space=sflag, size = 0x4, scoped, tag = 'scoped memory for tpu_custom_call.1']
    #allocation8 [shape = 'u8[32768]{0}', space=vmem, size = 0x8000, scoped, tag = 'input window, operand 2, single buffered']
    #allocation9 [shape = 'u8[4096]{0}', space=vmem, size = 0x1000, scoped, tag = 'output window, operand 0, single buffered']
    %9 = vsyncpa [#allocation4], 0
    %10 = vsyncpa [#allocation7], 0
    %11 = vsyncpa [#allocation5], 0
    // Predicated region
    $region2: #{tpu_custom_call.1} parent=1 // pred_check
      _
    $region3: #{tpu_custom_call.1} parent=1 // pred_check_branch
      %13 = sbr.rel (0) target = $region5
    $region4: #{tpu_custom_call.1} parent=1 // pred_region
      %s15 = ssub.s32 16, 16
      %16 = vsyncadd [#allocation4], %s15
      %s18 = sshll.u32 [#allocation3], 4
      %s19 = int_to_ptr.vmem [resolvable:$true] %s18
      %21 = dma.hbm_to_vmem [thread:$0]  %s0, 16, %s19, [#allocation4]
    $region5: #{tpu_custom_call.1} parent=1 // pred_fallthru
      _
    // Predicated region
    $region6: #{tpu_custom_call.1} parent=1 // pred_check
      _
    $region7: #{tpu_custom_call.1} parent=1 // pred_check_branch
      %23 = sbr.rel (0) target = $region9
    $region8: #{tpu_custom_call.1} parent=1 // pred_region
      %s25 = ssub.s32 128, 128
      %26 = vsyncadd [#allocation7], %s25
      %s28 = sshll.u32 [#allocation6], 4
      %s29 = int_to_ptr.vmem [resolvable:$true] %s28
      %31 = dma.hbm_to_vmem [thread:$0]  %s1, 128, %s29, [#allocation7]
    $region9: #{tpu_custom_call.1} parent=1 // pred_fallthru
      _
    // Predicated region
    $region10: #{tpu_custom_call.1} parent=1 // pred_check
      _
    $region11: #{tpu_custom_call.1} parent=1 // pred_check_branch
      %33 = sbr.rel (0) target = $region13
    $region12: #{tpu_custom_call.1} parent=1 // pred_region
      %s35 = ssub.s32 1024, 1024
      %36 = vsyncadd [#allocation7], %s35
      %s37 = sshll.u32 [#allocation8], 4
      %s38 = int_to_ptr.vmem [resolvable:$true] %s37
      %43 = dma.hbm_to_vmem [thread:$0]  %s2, 1024, %s38, [#allocation7], 64, 64, 4
    $region13: #{tpu_custom_call.1} parent=1 // pred_fallthru
      _
    // Predicated region
    $region14: #{tpu_custom_call.1} parent=1 // pred_check
      _
    $region15: #{tpu_custom_call.1} parent=1 // pred_check_branch
      %45 = sbr.rel (0) target = $region17
    $region16: #{tpu_custom_call.1} parent=1 // pred_region
      _
    $region17: #{tpu_custom_call.1} parent=1 // pred_fallthru
      _
    // Predicated region
    $region18: #{tpu_custom_call.1} parent=1 // pred_check
      _
    $region19: #{tpu_custom_call.1} parent=1 // pred_check_branch
      %47 = sbr.rel (0) target = $region21
    $region20: #{tpu_custom_call.1} parent=1 // pred_region
      %48 = dma.done [#allocation4], 16
    $region21: #{tpu_custom_call.1} parent=1 // pred_fallthru
      _
    // Predicated region
    $region22: #{tpu_custom_call.1} parent=1 // pred_check
      _
    $region23: #{tpu_custom_call.1} parent=1 // pred_check_branch
      %50 = sbr.rel (0) target = $region25
    $region24: #{tpu_custom_call.1} parent=1 // pred_region
      %51 = dma.done [#allocation7], 128
    $region25: #{tpu_custom_call.1} parent=1 // pred_fallthru
      _
    // Predicated region
    $region26: #{tpu_custom_call.1} parent=1 // pred_check
      _
    $region27: #{tpu_custom_call.1} parent=1 // pred_check_branch
      %53 = sbr.rel (0) target = $region29
    $region28: #{tpu_custom_call.1} parent=1 // pred_region
      %54 = dma.done [#allocation7], 1024
    $region29: #{tpu_custom_call.1} parent=1 // pred_fallthru
      _
    %p56 = scmp.eq.s32.totalorder 0, 0
    // Predicated region
    $region30: #{tpu_custom_call.1} parent=1 // pred_check
      %p57 = pneg %p56
    $region31: #{tpu_custom_call.1} parent=1 // pred_check_branch
      %59 = sbr.rel (%p57) target = $region33
    $region32: #{tpu_custom_call.1} parent=1 // pred_region
      %60 = vst [vmem:[#allocation2] sm:$0xff] 0.0
    $region33: #{tpu_custom_call.1} parent=1 // pred_fallthru
      _
    %v61 = vld [vmem:[#allocation6] sm:$0xff]
    %v62 = vld [vmem:[#allocation3] sm:$0x1]
    %v64 = vlaneseq
    %v65 = vshrl.u32 %v64, 7
    %v66 = vsub.s32 0, %v65
    %v67 = vrot.slane %v62, %v66
    %v69 = vmul.f32 %v61, %v67
    %v70 = vpack.c.bf16 %v69, %v69
    %v71 = vld [vmem:[#allocation2] sm:$0xff]
    %v72 = vld [vmem:[#allocation8] sm:$0xf]
    %v73 = vld [vmem:[#allocation8 + $0x4] sm:$0xf]
    %v74 = vld [vmem:[#allocation8 + $0x8] sm:$0xf]
    %v75 = vld [vmem:[#allocation8 + $0xc] sm:$0xf]
    %v76 = vld [vmem:[#allocation8 + $0x10] sm:$0xf]
    %v77 = vld [vmem:[#allocation8 + $0x14] sm:$0xf]
    %v78 = vld [vmem:[#allocation8 + $0x18] sm:$0xf]
    %v79 = vld [vmem:[#allocation8 + $0x1c] sm:$0xf]
    %v80 = vld [vmem:[#allocation8 + $0x20] sm:$0xf]
    %v81 = vld [vmem:[#allocation8 + $0x24] sm:$0xf]
    %v82 = vld [vmem:[#allocation8 + $0x28] sm:$0xf]
    %v83 = vld [vmem:[#allocation8 + $0x2c] sm:$0xf]
    %v84 = vld [vmem:[#allocation8 + $0x30] sm:$0xf]
    %v85 = vld [vmem:[#allocation8 + $0x34] sm:$0xf]
    %v86 = vld [vmem:[#allocation8 + $0x38] sm:$0xf]
    %v87 = vld [vmem:[#allocation8 + $0x3c] sm:$0xf]
    %v104 = vunpack.c.l.b16 %v72
    %v105 = vunpack.c.l.b16 %v73
    %v106 = vunpack.c.l.b16 %v74
    %v107 = vunpack.c.l.b16 %v75
    %v108 = vunpack.c.l.b16 %v76
    %v109 = vunpack.c.l.b16 %v77
    %v110 = vunpack.c.l.b16 %v78
    %v111 = vunpack.c.l.b16 %v79
    %v112 = vunpack.c.l.b16 %v80
    %v113 = vunpack.c.l.b16 %v81
    %v114 = vunpack.c.l.b16 %v82
    %v115 = vunpack.c.l.b16 %v83
    %v116 = vunpack.c.l.b16 %v84
    %v117 = vunpack.c.l.b16 %v85
    %v118 = vunpack.c.l.b16 %v86
    %v119 = vunpack.c.l.b16 %v87
    %v120 = vpack.c.b16 %v105, %v104
    %v121 = vpack.c.b16 %v107, %v106
    %v122 = vpack.c.b16 %v109, %v108
    %v123 = vpack.c.b16 %v111, %v110
    %v124 = vpack.c.b16 %v113, %v112
    %v125 = vpack.c.b16 %v115, %v114
    %v126 = vpack.c.b16 %v117, %v116
    %v127 = vpack.c.b16 %v119, %v118
    %136 = vmatprep.subr.bf16.mxu0 0
    %137 = vmatpush1.bf16.msra.mxu0 %v127
    %138 = vmatprep.subr.bf16.mxu0 0
    %139 = vmatpush1.bf16.msra.mxu0 %v126
    %140 = vmatprep.subr.bf16.mxu0 0
    %141 = vmatpush1.bf16.msra.mxu0 %v125
    %142 = vmatprep.subr.bf16.mxu0 0
    %143 = vmatpush1.bf16.msra.mxu0 %v124
    %144 = vmatprep.subr.bf16.mxu0 0
    %145 = vmatpush1.bf16.msra.mxu0 %v123
    %146 = vmatprep.subr.bf16.mxu0 0
    %147 = vmatpush1.bf16.msra.mxu0 %v122
    %148 = vmatprep.subr.bf16.mxu0 0
    %149 = vmatpush1.bf16.msra.mxu0 %v121
    %150 = vmatprep.subr.bf16.mxu0 0
    %151 = vmatpush1.bf16.msra.mxu0 %v120
    %152 = vmatprep.subr.bf16.mxu0 0
    %153 = vmatpush2.bf16.msra.mxu0 0
    %154 = vmatprep.subr.bf16.mxu0 0
    %155 = vmatpush2.bf16.msra.mxu0 0
    %156 = vmatprep.subr.bf16.mxu0 0
    %157 = vmatpush2.bf16.msra.mxu0 0
    %158 = vmatprep.subr.bf16.mxu0 0
    %159 = vmatpush2.bf16.msra.mxu0 0
    %160 = vmatprep.subr.bf16.mxu0 0
    %161 = vmatpush2.bf16.msra.mxu0 0
    %162 = vmatprep.subr.bf16.mxu0 0
    %163 = vmatpush2.bf16.msra.mxu0 0
    %164 = vmatprep.subr.bf16.mxu0 0
    %165 = vmatpush2.bf16.msra.mxu0 0
    %166 = vmatprep.subr.bf16.mxu0 0
    %167 = vmatpush2.bf16.msra.mxu0 0
    %168 = vmatprep.mubr.bf16.mxu0 0
    %169 = vmatmul.mubr.bf16.gmra.mxu0 %v70
    %v170 = vpop.f32.mrf.mxu0
    %v171 = vadd.f32 0.0, %v170
    %v172 = vpop.f32.mrf.mxu0
    %v173 = vpop.f32.mrf.mxu0
    %v174 = vpop.f32.mrf.mxu0
    %175 = vdwg.mxu0
    %v176 = vadd.f32 %v71, %v171
    %177 = vst [vmem:[#allocation2] sm:$0xff] %v176
    // Predicated region
    $region34: #{tpu_custom_call.1} parent=1 // pred_check
      %p178 = pneg %p56
    $region35: #{tpu_custom_call.1} parent=1 // pred_check_branch
      %180 = sbr.rel (%p178) target = $region37
    $region36: #{tpu_custom_call.1} parent=1 // pred_region
      %v181 = vld [vmem:[#allocation2] sm:$0xff]
      %v182 = vld [vmem:[%s3] sm:$0x1]
      %v184 = vlaneseq
      %v185 = vshrl.u32 %v184, 7
      %v186 = vsub.s32 0, %v185
      %v187 = vrot.slane %v182, %v186
      %v189 = vadd.f32 %v181, %v187
      %190 = vst [vmem:[#allocation9] sm:$0xff] %v189
    $region37: #{tpu_custom_call.1} parent=1 // pred_fallthru
      _
    // Predicated region
    $region38: #{tpu_custom_call.1} parent=1 // pred_check
      _
    $region39: #{tpu_custom_call.1} parent=1 // pred_check_branch
      %192 = sbr.rel (0) target = $region41
    $region40: #{tpu_custom_call.1} parent=1 // pred_region
      %s194 = ssub.s32 128, 128
      %195 = vsyncadd [#allocation5], %s194
      %s197 = sshll.u32 [#allocation9], 4
      %s198 = int_to_ptr.vmem [resolvable:$true] %s197
      %200 = dma.vmem_to_hbm [thread:$0]  %s198, 128, %s4, [#allocation5]
    $region41: #{tpu_custom_call.1} parent=1 // pred_fallthru
      _
    // Predicated region
    $region42: #{tpu_custom_call.1} parent=1 // pred_check
      _
    $region43: #{tpu_custom_call.1} parent=1 // pred_check_branch
      %202 = sbr.rel (0) target = $region45
    $region44: #{tpu_custom_call.1} parent=1 // pred_region
      %203 = dma.done [#allocation5], 128
    $region45: #{tpu_custom_call.1} parent=1 // pred_fallthru
      _
    %204 = vsyncpa [#allocation4], 1
    %205 = vsyncpa [#allocation7], 1
    %206 = vsyncpa [#allocation5], 1

</llo_original>
